<compile_context>
chip_gen: v5e
topology: v5e:2x2
jax: 0.10.0
libtpu: 0.0.40
codegen_flags: <defaults>
</compile_context>

<pallas_src>
import functools
import math

import jax
import jax.numpy as jnp
from jax.experimental import pallas as pl
from jax.experimental.pallas import tpu as pltpu

LN_EPS = 1e-5                      # nn.LayerNorm default eps
INV_SQRT2 = 0.7071067811865476

# rows of the packed bias / LayerNorm-parameter array
ROW_BQKV, ROW_B1, ROW_BO, ROW_B2, ROW_G1, ROW_BE1, ROW_G2, ROW_BE2 = range(8)


def _layernorm(x, gamma, beta):
    mu = jnp.mean(x, axis=-1, keepdims=True)
    var = jnp.mean((x - mu) ** 2, axis=-1, keepdims=True)
    return (x - mu) * jax.lax.rsqrt(var + LN_EPS) * gamma + beta


def _gelu_exact(x):
    # nn.GELU() default = exact erf formulation
    return 0.5 * x * (1.0 + jax.lax.erf(x * INV_SQRT2))


def encoder_layer_kernel(num_heads,
                         x_ref, wqkv_ref, wo_ref, w1_ref, w2_ref, vecs_ref,
                         out_ref):
    """One grid step processes one batch element: x_ref is (S, D)."""
    S, D = x_ref.shape
    FF = w1_ref.shape[1]
    H = num_heads
    hd = D // H

    def vec(row, n):                       # (1, n) slice of the packed vectors
        return vecs_ref[row:row + 1, 0:n]

    x = x_ref[...]                         # (S, D) fp32
    xh = x.astype(jnp.bfloat16)

    # ---- fused QKV projection (softmax scale pre-folded into the q columns) --
    qkv = jnp.dot(xh, wqkv_ref[...], preferred_element_type=jnp.float32)
    qkv = (qkv + vec(ROW_BQKV, 3 * D)).astype(jnp.bfloat16)       # (S, 3D) bf16
    q = qkv[:, 0:D]
    k = qkv[:, D:2 * D]
    v = qkv[:, 2 * D:3 * D]

    # ---- attention fused with out_proj:
    #      attn_out = sum_h softmax(q_h k_h^T) v_h @ Wo[h]
    # (no (S, D) scratch, no masked sub-lane stores; Wo[h] is a leading index).
    # TODO(synk): for long sequences add a KV grid axis with online-softmax
    #             (flash) accumulators instead of materializing (S, S) scores.
    acc = jnp.zeros((S, D), jnp.float32)
    for h in range(H):
        sl = slice(h * hd, (h + 1) * hd)
        qh, kh, vh = q[:, sl], k[:, sl], v[:, sl]
        s = jnp.dot(qh, kh.T, preferred_element_type=jnp.float32)    # (S, S)
        s = s - jnp.max(s, axis=-1, keepdims=True)
        p = jnp.exp(s)
        inv = pl.reciprocal(jnp.sum(p, axis=-1, keepdims=True), approx=True)
        pn = (p * inv).astype(jnp.bfloat16)
        oh = jnp.dot(pn, vh, preferred_element_type=jnp.float32)     # (S, hd)
        acc = acc + jnp.dot(oh.astype(jnp.bfloat16), wo_ref[h],
                            preferred_element_type=jnp.float32)      # (S, D)
    attn_out = acc + vec(ROW_BO, D)

    # ---- residual + norm1 (fp32) ----
    y = _layernorm(x + attn_out, vec(ROW_G1, D), vec(ROW_BE1, D))

    # ---- FFN: Linear -> GELU -> Linear -> Dropout ----
    h1 = jnp.dot(y.astype(jnp.bfloat16), w1_ref[...],
                 preferred_element_type=jnp.float32) + vec(ROW_B1, FF)
    h1 = _gelu_exact(h1)                   # fp32 transcendental
    ffn = jnp.dot(h1.astype(jnp.bfloat16), w2_ref[...],
                  preferred_element_type=jnp.float32) + vec(ROW_B2, D)
    # TODO(synk): nn.Dropout(0.2) is identity at inference; train-mode dropout omitted.

    # ---- residual + norm2 ----
    out_ref[...] = _layernorm(y + ffn, vec(ROW_G2, D), vec(ROW_BE2, D))


def _vmem_limit_bytes():
    """~75% of physical VMEM (96 MiB on v5e/v6e, 48 MiB on v7x); safe fallback."""
    try:
        cap = pltpu.get_tpu_info().vmem_capacity_bytes
    except Exception:
        cap = 64 * 1024 * 1024
    return int(cap) * 3 // 4


def _pack_weights(params, num_heads):
    D = params["wq"].shape[0]
    FF = params["w1"].shape[0]
    hd = D // num_heads
    scale = 1.0 / math.sqrt(hd)

    # PyTorch layout (out, in) -> (in, out); fold softmax scale into q; fuse QKV.
    wqkv_t = jnp.concatenate(
        [(params["wq"] * scale).T, params["wk"].T, params["wv"].T], axis=1
    ).astype(jnp.bfloat16)                                    # (D, 3D)
    # out_proj weight reshaped so each head's (hd, D) slice is a leading index.
    wo_t = params["wo"].T.reshape(num_heads, hd, D).astype(jnp.bfloat16)
    w1_t = params["w1"].T.astype(jnp.bfloat16)                # (D, FF)
    w2_t = params["w2"].T.astype(jnp.bfloat16)                # (FF, D)

    # pack all bias / LayerNorm vectors into one (8, W) fp32 array (one DMA)
    W = max(3 * D, FF, D)
    b_qkv = jnp.concatenate([params["bq"] * scale, params["bk"], params["bv"]])
    vecs = jnp.zeros((8, W), jnp.float32)
    vecs = vecs.at[ROW_BQKV, :3 * D].set(b_qkv)
    vecs = vecs.at[ROW_B1, :FF].set(params["b1"])
    vecs = vecs.at[ROW_BO, :D].set(params["bo"])
    vecs = vecs.at[ROW_B2, :D].set(params["b2"])
    vecs = vecs.at[ROW_G1, :D].set(params["g1"])
    vecs = vecs.at[ROW_BE1, :D].set(params["be1"])
    vecs = vecs.at[ROW_G2, :D].set(params["g2"])
    vecs = vecs.at[ROW_BE2, :D].set(params["be2"])
    return wqkv_t, wo_t, w1_t, w2_t, vecs


def flash_encoder_layer(src, params, num_heads):
    B, S, D = src.shape
    FF = params["w1"].shape[0]
    hd = D // num_heads
    wqkv_t, wo_t, w1_t, w2_t, vecs = _pack_weights(params, num_heads)
    W = vecs.shape[1]

    kernel = functools.partial(encoder_layer_kernel, num_heads)
    const2 = lambda b: (0, 0)
    const3 = lambda b: (0, 0, 0)
    out = pl.pallas_call(
        kernel,
        out_shape=jax.ShapeDtypeStruct((B, S, D), jnp.float32),
        grid=(B,),
        in_specs=[
            pl.BlockSpec((None, S, D), lambda b: (b, 0, 0)),   # activations (per batch)
            pl.BlockSpec((D, 3 * D), const2),                  # fused qkv weight (resident)
            pl.BlockSpec((num_heads, hd, D), const3),          # out_proj weight (H, hd, D)
            pl.BlockSpec((D, FF), const2),                     # ffn linear 1
            pl.BlockSpec((FF, D), const2),                     # ffn linear 2
            pl.BlockSpec((8, W), const2),                      # packed biases / LN params
        ],
        out_specs=pl.BlockSpec((None, S, D), lambda b: (b, 0, 0)),
        compiler_params=pltpu.CompilerParams(
            dimension_semantics=("parallel",),
            vmem_limit_bytes=_vmem_limit_bytes()),
    )(src, wqkv_t, wo_t, w1_t, w2_t, vecs)
    return out


def reference_forward(src, params, num_heads):
    """Pure-JAX reference mirroring the kernel's precision choices."""
    B, S, D = src.shape
    hd = D // num_heads
    scale = 1.0 / math.sqrt(hd)

    x = src.reshape(B * S, D)
    xh = x.astype(jnp.bfloat16)

    wqkv = jnp.concatenate(
        [(params["wq"] * scale).T, params["wk"].T, params["wv"].T], axis=1
    ).astype(jnp.bfloat16)
    b_qkv = jnp.concatenate([params["bq"] * scale, params["bk"], params["bv"]])
    qkv = (jnp.dot(xh, wqkv, preferred_element_type=jnp.float32) + b_qkv
           ).astype(jnp.bfloat16)

    q = qkv[:, :D].reshape(B, S, num_heads, hd)
    k = qkv[:, D:2 * D].reshape(B, S, num_heads, hd)
    v = qkv[:, 2 * D:].reshape(B, S, num_heads, hd)

    s = jnp.einsum('bqhd,bkhd->bhqk', q, k, preferred_element_type=jnp.float32)
    s = s - jnp.max(s, axis=-1, keepdims=True)
    p = jnp.exp(s)
    p = p / jnp.sum(p, axis=-1, keepdims=True)
    o = jnp.einsum('bhqk,bkhd->bqhd', p.astype(jnp.bfloat16), v,
                   preferred_element_type=jnp.float32)
    attn = o.reshape(B * S, D)

    attn_out = jnp.dot(attn.astype(jnp.bfloat16),
                       params["wo"].T.astype(jnp.bfloat16),
                       preferred_element_type=jnp.float32) + params["bo"]

    def ln(z, g, be):
        mu = jnp.mean(z, -1, keepdims=True)
        var = jnp.mean((z - mu) ** 2, -1, keepdims=True)
        return (z - mu) * jax.lax.rsqrt(var + LN_EPS) * g + be

    y = ln(x + attn_out, params["g1"], params["be1"])
    h1 = jnp.dot(y.astype(jnp.bfloat16), params["w1"].T.astype(jnp.bfloat16),
                 preferred_element_type=jnp.float32) + params["b1"]
    h1 = _gelu_exact(h1)
    ffn = jnp.dot(h1.astype(jnp.bfloat16), params["w2"].T.astype(jnp.bfloat16),
                  preferred_element_type=jnp.float32) + params["b2"]
    out = ln(y + ffn, params["g2"], params["be2"])
    return out.reshape(B, S, D)


if __name__ == "__main__":
    B, S, D, H, FF = 2, 8, 32, 4, 64   # d_model=32, num_heads=4, dim_feedforward=64

    key = jax.random.PRNGKey(0)
    keys = jax.random.split(key, 16)

    def init(k, shape, scale=0.1):
        return jax.random.normal(k, shape, jnp.float32) * scale

    params = dict(
        wq=init(keys[0], (D, D)), bq=init(keys[1], (D,)),
        wk=init(keys[2], (D, D)), bk=init(keys[3], (D,)),
        wv=init(keys[4], (D, D)), bv=init(keys[5], (D,)),
        wo=init(keys[6], (D, D)), bo=init(keys[7], (D,)),
        w1=init(keys[8], (FF, D)), b1=init(keys[9], (FF,)),
        w2=init(keys[10], (D, FF)), b2=init(keys[11], (D,)),
        g1=jnp.ones((D,), jnp.float32), be1=jnp.zeros((D,), jnp.float32),
        g2=jnp.ones((D,), jnp.float32), be2=jnp.zeros((D,), jnp.float32),
    )
    src = jax.random.normal(keys[12], (B, S, D), jnp.float32)

    out = flash_encoder_layer(src, params, H)
    out = jax.block_until_ready(out)

    ref = reference_forward(src, params, H)
    assert out.shape == (B, S, D)
    assert bool(jnp.all(jnp.isfinite(out)))
    err = float(jnp.max(jnp.abs(out - ref)))
    assert err < 5e-2, f"max abs err {err}"
    print("KERNEL_OK")
</pallas_src>

<mosaic_0001>
module attributes {stable_mosaic.version = 11 : i64} {
  func.func @encoder_layer_kernel(%arg0: i32, %arg1: memref<1x8x32xf32, #tpu.memory_space<vmem>>, %arg2: memref<32x96xbf16, #tpu.memory_space<vmem>>, %arg3: memref<4x8x32xbf16, #tpu.memory_space<vmem>>, %arg4: memref<32x64xbf16, #tpu.memory_space<vmem>>, %arg5: memref<64x32xbf16, #tpu.memory_space<vmem>>, %arg6: memref<8x96xf32, #tpu.memory_space<vmem>>, %arg7: memref<1x8x32xf32, #tpu.memory_space<vmem>>) attributes {dimension_semantics = [#tpu.dimension_semantics<parallel>], iteration_bounds = array<i64: 2>, scalar_prefetch = 0 : i64, scratch_operands = 0 : i64, tpu.core_type = #tpu.core_type<tc>, window_params = [{transform_indices = @transform_0, window_bounds = array<i64: 1, 8, 32>}, {pipeline_mode = #tpu.pipeline_mode<synchronous>, transform_indices = @transform_1, window_bounds = array<i64: 32, 96>}, {pipeline_mode = #tpu.pipeline_mode<synchronous>, transform_indices = @transform_2, window_bounds = array<i64: 4, 8, 32>}, {pipeline_mode = #tpu.pipeline_mode<synchronous>, transform_indices = @transform_3, window_bounds = array<i64: 32, 64>}, {pipeline_mode = #tpu.pipeline_mode<synchronous>, transform_indices = @transform_4, window_bounds = array<i64: 64, 32>}, {pipeline_mode = #tpu.pipeline_mode<synchronous>, transform_indices = @transform_5, window_bounds = array<i64: 8, 96>}, {transform_indices = @transform_6, window_bounds = array<i64: 1, 8, 32>}]} {
    %c0 = arith.constant 0 : index
    %c0_0 = arith.constant 0 : index
    %c0_1 = arith.constant 0 : index
    %0 = vector.load %arg1[%c0, %c0_0, %c0_1] : memref<1x8x32xf32, #tpu.memory_space<vmem>>, vector<1x8x32xf32>
    %1 = vector.shape_cast %0 : vector<1x8x32xf32> to vector<8x32xf32>
    %2 = arith.truncf %1 : vector<8x32xf32> to vector<8x32xbf16>
    %c0_2 = arith.constant 0 : index
    %c0_3 = arith.constant 0 : index
    %3 = vector.load %arg2[%c0_2, %c0_3] : memref<32x96xbf16, #tpu.memory_space<vmem>>, vector<32x96xbf16>
    %cst = arith.constant dense<0.000000e+00> : vector<8x96xf32>
    %4 = tpu.matmul %2, %3, %cst {dimension_numbers = #tpu.dot_dimension_numbers<[1], [0], [0], [1], [0, 0, 1, 1], [], []>} : vector<8x32xbf16>, vector<32x96xbf16>, vector<8x96xf32> -> vector<8x96xf32>
    %c0_4 = arith.constant 0 : index
    %c0_5 = arith.constant 0 : index
    %5 = vector.load %arg6[%c0_4, %c0_5] : memref<8x96xf32, #tpu.memory_space<vmem>>, vector<1x96xf32>
    %6 = vector.broadcast %5 : vector<1x96xf32> to vector<8x96xf32>
    %7 = arith.addf %4, %6 : vector<8x96xf32>
    %8 = arith.truncf %7 : vector<8x96xf32> to vector<8x96xbf16>
    %9 = vector.extract_strided_slice %8 {offsets = [0, 0], sizes = [8, 32], strides = [1, 1]} : vector<8x96xbf16> to vector<8x32xbf16>
    %10 = vector.extract_strided_slice %8 {offsets = [0, 32], sizes = [8, 32], strides = [1, 1]} : vector<8x96xbf16> to vector<8x32xbf16>
    %11 = vector.extract_strided_slice %8 {offsets = [0, 64], sizes = [8, 32], strides = [1, 1]} : vector<8x96xbf16> to vector<8x32xbf16>
    %cst_6 = arith.constant 0.000000e+00 : f32
    %12 = vector.broadcast %cst_6 : f32 to vector<8x32xf32>
    %13 = vector.extract_strided_slice %9 {offsets = [0, 0], sizes = [8, 8], strides = [1, 1]} : vector<8x32xbf16> to vector<8x8xbf16>
    %14 = vector.extract_strided_slice %10 {offsets = [0, 0], sizes = [8, 8], strides = [1, 1]} : vector<8x32xbf16> to vector<8x8xbf16>
    %15 = vector.extract_strided_slice %11 {offsets = [0, 0], sizes = [8, 8], strides = [1, 1]} : vector<8x32xbf16> to vector<8x8xbf16>
    %16 = tpu.transpose %14, [1, 0] : vector<8x8xbf16> -> vector<8x8xbf16>
    %cst_7 = arith.constant dense<0.000000e+00> : vector<8x8xf32>
    %17 = tpu.matmul %13, %16, %cst_7 {dimension_numbers = #tpu.dot_dimension_numbers<[1], [0], [0], [1], [0, 0, 1, 1], [], []>} : vector<8x8xbf16>, vector<8x8xbf16>, vector<8x8xf32> -> vector<8x8xf32>
    %cst_8 = arith.constant dense<0xFF800000> : vector<8xf32>
    %18 = vector.multi_reduction <maximumf>, %17, %cst_8 [1] : vector<8x8xf32> to vector<8xf32>
    %19 = vector.shape_cast %18 : vector<8xf32> to vector<8x1xf32>
    %20 = vector.broadcast %19 : vector<8x1xf32> to vector<8x8xf32>
    %21 = arith.subf %17, %20 : vector<8x8xf32>
    %22 = math.exp %21 : vector<8x8xf32>
    %cst_9 = arith.constant dense<0.000000e+00> : vector<8xf32>
    %23 = vector.multi_reduction <add>, %22, %cst_9 [1] : vector<8x8xf32> to vector<8xf32>
    %24 = vector.shape_cast %23 : vector<8xf32> to vector<8x1xf32>
    %25 = tpu.reciprocal %24 {approx = true} : vector<8x1xf32> -> vector<8x1xf32>
    %26 = vector.broadcast %25 : vector<8x1xf32> to vector<8x8xf32>
    %27 = arith.mulf %22, %26 : vector<8x8xf32>
    %28 = arith.truncf %27 : vector<8x8xf32> to vector<8x8xbf16>
    %cst_10 = arith.constant dense<0.000000e+00> : vector<8x8xf32>
    %29 = tpu.matmul %28, %15, %cst_10 {dimension_numbers = #tpu.dot_dimension_numbers<[1], [0], [0], [1], [0, 0, 1, 1], [], []>} : vector<8x8xbf16>, vector<8x8xbf16>, vector<8x8xf32> -> vector<8x8xf32>
    %30 = arith.truncf %29 : vector<8x8xf32> to vector<8x8xbf16>
    %c0_11 = arith.constant 0 : index
    %c0_12 = arith.constant 0 : index
    %c0_13 = arith.constant 0 : index
    %31 = vector.load %arg3[%c0_11, %c0_12, %c0_13] : memref<4x8x32xbf16, #tpu.memory_space<vmem>>, vector<1x8x32xbf16>
    %32 = vector.shape_cast %31 : vector<1x8x32xbf16> to vector<8x32xbf16>
    %cst_14 = arith.constant dense<0.000000e+00> : vector<8x32xf32>
    %33 = tpu.matmul %30, %32, %cst_14 {dimension_numbers = #tpu.dot_dimension_numbers<[1], [0], [0], [1], [0, 0, 1, 1], [], []>} : vector<8x8xbf16>, vector<8x32xbf16>, vector<8x32xf32> -> vector<8x32xf32>
    %34 = arith.addf %12, %33 : vector<8x32xf32>
    %35 = vector.extract_strided_slice %9 {offsets = [0, 8], sizes = [8, 8], strides = [1, 1]} : vector<8x32xbf16> to vector<8x8xbf16>
    %36 = vector.extract_strided_slice %10 {offsets = [0, 8], sizes = [8, 8], strides = [1, 1]} : vector<8x32xbf16> to vector<8x8xbf16>
    %37 = vector.extract_strided_slice %11 {offsets = [0, 8], sizes = [8, 8], strides = [1, 1]} : vector<8x32xbf16> to vector<8x8xbf16>
    %38 = tpu.transpose %36, [1, 0] : vector<8x8xbf16> -> vector<8x8xbf16>
    %cst_15 = arith.constant dense<0.000000e+00> : vector<8x8xf32>
    %39 = tpu.matmul %35, %38, %cst_15 {dimension_numbers = #tpu.dot_dimension_numbers<[1], [0], [0], [1], [0, 0, 1, 1], [], []>} : vector<8x8xbf16>, vector<8x8xbf16>, vector<8x8xf32> -> vector<8x8xf32>
    %cst_16 = arith.constant dense<0xFF800000> : vector<8xf32>
    %40 = vector.multi_reduction <maximumf>, %39, %cst_16 [1] : vector<8x8xf32> to vector<8xf32>
    %41 = vector.shape_cast %40 : vector<8xf32> to vector<8x1xf32>
    %42 = vector.broadcast %41 : vector<8x1xf32> to vector<8x8xf32>
    %43 = arith.subf %39, %42 : vector<8x8xf32>
    %44 = math.exp %43 : vector<8x8xf32>
    %cst_17 = arith.constant dense<0.000000e+00> : vector<8xf32>
    %45 = vector.multi_reduction <add>, %44, %cst_17 [1] : vector<8x8xf32> to vector<8xf32>
    %46 = vector.shape_cast %45 : vector<8xf32> to vector<8x1xf32>
    %47 = tpu.reciprocal %46 {approx = true} : vector<8x1xf32> -> vector<8x1xf32>
    %48 = vector.broadcast %47 : vector<8x1xf32> to vector<8x8xf32>
    %49 = arith.mulf %44, %48 : vector<8x8xf32>
    %50 = arith.truncf %49 : vector<8x8xf32> to vector<8x8xbf16>
    %cst_18 = arith.constant dense<0.000000e+00> : vector<8x8xf32>
    %51 = tpu.matmul %50, %37, %cst_18 {dimension_numbers = #tpu.dot_dimension_numbers<[1], [0], [0], [1], [0, 0, 1, 1], [], []>} : vector<8x8xbf16>, vector<8x8xbf16>, vector<8x8xf32> -> vector<8x8xf32>
    %52 = arith.truncf %51 : vector<8x8xf32> to vector<8x8xbf16>
    %c1 = arith.constant 1 : index
    %c0_19 = arith.constant 0 : index
    %c0_20 = arith.constant 0 : index
    %53 = vector.load %arg3[%c1, %c0_19, %c0_20] : memref<4x8x32xbf16, #tpu.memory_space<vmem>>, vector<1x8x32xbf16>
    %54 = vector.shape_cast %53 : vector<1x8x32xbf16> to vector<8x32xbf16>
    %cst_21 = arith.constant dense<0.000000e+00> : vector<8x32xf32>
    %55 = tpu.matmul %52, %54, %cst_21 {dimension_numbers = #tpu.dot_dimension_numbers<[1], [0], [0], [1], [0, 0, 1, 1], [], []>} : vector<8x8xbf16>, vector<8x32xbf16>, vector<8x32xf32> -> vector<8x32xf32>
    %56 = arith.addf %34, %55 : vector<8x32xf32>
    %57 = vector.extract_strided_slice %9 {offsets = [0, 16], sizes = [8, 8], strides = [1, 1]} : vector<8x32xbf16> to vector<8x8xbf16>
    %58 = vector.extract_strided_slice %10 {offsets = [0, 16], sizes = [8, 8], strides = [1, 1]} : vector<8x32xbf16> to vector<8x8xbf16>
    %59 = vector.extract_strided_slice %11 {offsets = [0, 16], sizes = [8, 8], strides = [1, 1]} : vector<8x32xbf16> to vector<8x8xbf16>
    %60 = tpu.transpose %58, [1, 0] : vector<8x8xbf16> -> vector<8x8xbf16>
    %cst_22 = arith.constant dense<0.000000e+00> : vector<8x8xf32>
    %61 = tpu.matmul %57, %60, %cst_22 {dimension_numbers = #tpu.dot_dimension_numbers<[1], [0], [0], [1], [0, 0, 1, 1], [], []>} : vector<8x8xbf16>, vector<8x8xbf16>, vector<8x8xf32> -> vector<8x8xf32>
    %cst_23 = arith.constant dense<0xFF800000> : vector<8xf32>
    %62 = vector.multi_reduction <maximumf>, %61, %cst_23 [1] : vector<8x8xf32> to vector<8xf32>
    %63 = vector.shape_cast %62 : vector<8xf32> to vector<8x1xf32>
    %64 = vector.broadcast %63 : vector<8x1xf32> to vector<8x8xf32>
    %65 = arith.subf %61, %64 : vector<8x8xf32>
    %66 = math.exp %65 : vector<8x8xf32>
    %cst_24 = arith.constant dense<0.000000e+00> : vector<8xf32>
    %67 = vector.multi_reduction <add>, %66, %cst_24 [1] : vector<8x8xf32> to vector<8xf32>
    %68 = vector.shape_cast %67 : vector<8xf32> to vector<8x1xf32>
    %69 = tpu.reciprocal %68 {approx = true} : vector<8x1xf32> -> vector<8x1xf32>
    %70 = vector.broadcast %69 : vector<8x1xf32> to vector<8x8xf32>
    %71 = arith.mulf %66, %70 : vector<8x8xf32>
    %72 = arith.truncf %71 : vector<8x8xf32> to vector<8x8xbf16>
    %cst_25 = arith.constant dense<0.000000e+00> : vector<8x8xf32>
    %73 = tpu.matmul %72, %59, %cst_25 {dimension_numbers = #tpu.dot_dimension_numbers<[1], [0], [0], [1], [0, 0, 1, 1], [], []>} : vector<8x8xbf16>, vector<8x8xbf16>, vector<8x8xf32> -> vector<8x8xf32>
    %74 = arith.truncf %73 : vector<8x8xf32> to vector<8x8xbf16>
    %c2 = arith.constant 2 : index
    %c0_26 = arith.constant 0 : index
    %c0_27 = arith.constant 0 : index
    %75 = vector.load %arg3[%c2, %c0_26, %c0_27] : memref<4x8x32xbf16, #tpu.memory_space<vmem>>, vector<1x8x32xbf16>
    %76 = vector.shape_cast %75 : vector<1x8x32xbf16> to vector<8x32xbf16>
    %cst_28 = arith.constant dense<0.000000e+00> : vector<8x32xf32>
    %77 = tpu.matmul %74, %76, %cst_28 {dimension_numbers = #tpu.dot_dimension_numbers<[1], [0], [0], [1], [0, 0, 1, 1], [], []>} : vector<8x8xbf16>, vector<8x32xbf16>, vector<8x32xf32> -> vector<8x32xf32>
    %78 = arith.addf %56, %77 : vector<8x32xf32>
    %79 = vector.extract_strided_slice %9 {offsets = [0, 24], sizes = [8, 8], strides = [1, 1]} : vector<8x32xbf16> to vector<8x8xbf16>
    %80 = vector.extract_strided_slice %10 {offsets = [0, 24], sizes = [8, 8], strides = [1, 1]} : vector<8x32xbf16> to vector<8x8xbf16>
    %81 = vector.extract_strided_slice %11 {offsets = [0, 24], sizes = [8, 8], strides = [1, 1]} : vector<8x32xbf16> to vector<8x8xbf16>
    %82 = tpu.transpose %80, [1, 0] : vector<8x8xbf16> -> vector<8x8xbf16>
    %cst_29 = arith.constant dense<0.000000e+00> : vector<8x8xf32>
    %83 = tpu.matmul %79, %82, %cst_29 {dimension_numbers = #tpu.dot_dimension_numbers<[1], [0], [0], [1], [0, 0, 1, 1], [], []>} : vector<8x8xbf16>, vector<8x8xbf16>, vector<8x8xf32> -> vector<8x8xf32>
    %cst_30 = arith.constant dense<0xFF800000> : vector<8xf32>
    %84 = vector.multi_reduction <maximumf>, %83, %cst_30 [1] : vector<8x8xf32> to vector<8xf32>
    %85 = vector.shape_cast %84 : vector<8xf32> to vector<8x1xf32>
    %86 = vector.broadcast %85 : vector<8x1xf32> to vector<8x8xf32>
    %87 = arith.subf %83, %86 : vector<8x8xf32>
    %88 = math.exp %87 : vector<8x8xf32>
    %cst_31 = arith.constant dense<0.000000e+00> : vector<8xf32>
    %89 = vector.multi_reduction <add>, %88, %cst_31 [1] : vector<8x8xf32> to vector<8xf32>
    %90 = vector.shape_cast %89 : vector<8xf32> to vector<8x1xf32>
    %91 = tpu.reciprocal %90 {approx = true} : vector<8x1xf32> -> vector<8x1xf32>
    %92 = vector.broadcast %91 : vector<8x1xf32> to vector<8x8xf32>
    %93 = arith.mulf %88, %92 : vector<8x8xf32>
    %94 = arith.truncf %93 : vector<8x8xf32> to vector<8x8xbf16>
    %cst_32 = arith.constant dense<0.000000e+00> : vector<8x8xf32>
    %95 = tpu.matmul %94, %81, %cst_32 {dimension_numbers = #tpu.dot_dimension_numbers<[1], [0], [0], [1], [0, 0, 1, 1], [], []>} : vector<8x8xbf16>, vector<8x8xbf16>, vector<8x8xf32> -> vector<8x8xf32>
    %96 = arith.truncf %95 : vector<8x8xf32> to vector<8x8xbf16>
    %c3 = arith.constant 3 : index
    %c0_33 = arith.constant 0 : index
    %c0_34 = arith.constant 0 : index
    %97 = vector.load %arg3[%c3, %c0_33, %c0_34] : memref<4x8x32xbf16, #tpu.memory_space<vmem>>, vector<1x8x32xbf16>
    %98 = vector.shape_cast %97 : vector<1x8x32xbf16> to vector<8x32xbf16>
    %cst_35 = arith.constant dense<0.000000e+00> : vector<8x32xf32>
    %99 = tpu.matmul %96, %98, %cst_35 {dimension_numbers = #tpu.dot_dimension_numbers<[1], [0], [0], [1], [0, 0, 1, 1], [], []>} : vector<8x8xbf16>, vector<8x32xbf16>, vector<8x32xf32> -> vector<8x32xf32>
    %100 = arith.addf %78, %99 : vector<8x32xf32>
    %c2_36 = arith.constant 2 : index
    %c0_37 = arith.constant 0 : index
    %101 = vector.load %arg6[%c2_36, %c0_37] : memref<8x96xf32, #tpu.memory_space<vmem>>, vector<1x32xf32>
    %102 = vector.broadcast %101 : vector<1x32xf32> to vector<8x32xf32>
    %103 = arith.addf %100, %102 : vector<8x32xf32>
    %104 = arith.addf %1, %103 : vector<8x32xf32>
    %c4 = arith.constant 4 : index
    %c0_38 = arith.constant 0 : index
    %105 = vector.load %arg6[%c4, %c0_38] : memref<8x96xf32, #tpu.memory_space<vmem>>, vector<1x32xf32>
    %c5 = arith.constant 5 : index
    %c0_39 = arith.constant 0 : index
    %106 = vector.load %arg6[%c5, %c0_39] : memref<8x96xf32, #tpu.memory_space<vmem>>, vector<1x32xf32>
    %cst_40 = arith.constant dense<0.000000e+00> : vector<8xf32>
    %107 = vector.multi_reduction <add>, %104, %cst_40 [1] : vector<8x32xf32> to vector<8xf32>
    %108 = vector.shape_cast %107 : vector<8xf32> to vector<8x1xf32>
    %cst_41 = arith.constant 3.200000e+01 : f32
    %109 = vector.broadcast %cst_41 : f32 to vector<8x1xf32>
    %110 = arith.divf %108, %109 : vector<8x1xf32>
    %111 = vector.broadcast %110 : vector<8x1xf32> to vector<8x32xf32>
    %112 = arith.subf %104, %111 : vector<8x32xf32>
    %113 = arith.mulf %112, %112 : vector<8x32xf32>
    %cst_42 = arith.constant dense<0.000000e+00> : vector<8xf32>
    %114 = vector.multi_reduction <add>, %113, %cst_42 [1] : vector<8x32xf32> to vector<8xf32>
    %115 = vector.shape_cast %114 : vector<8xf32> to vector<8x1xf32>
    %cst_43 = arith.constant 3.200000e+01 : f32
    %116 = vector.broadcast %cst_43 : f32 to vector<8x1xf32>
    %117 = arith.divf %115, %116 : vector<8x1xf32>
    %118 = vector.broadcast %110 : vector<8x1xf32> to vector<8x32xf32>
    %119 = arith.subf %104, %118 : vector<8x32xf32>
    %cst_44 = arith.constant 9.99999974E-6 : f32
    %120 = vector.broadcast %cst_44 : f32 to vector<8x1xf32>
    %121 = arith.addf %117, %120 : vector<8x1xf32>
    %122 = math.rsqrt %121 : vector<8x1xf32>
    %123 = vector.broadcast %122 : vector<8x1xf32> to vector<8x32xf32>
    %124 = arith.mulf %119, %123 : vector<8x32xf32>
    %125 = vector.broadcast %105 : vector<1x32xf32> to vector<8x32xf32>
    %126 = arith.mulf %124, %125 : vector<8x32xf32>
    %127 = vector.broadcast %106 : vector<1x32xf32> to vector<8x32xf32>
    %128 = arith.addf %126, %127 : vector<8x32xf32>
    %129 = arith.truncf %128 : vector<8x32xf32> to vector<8x32xbf16>
    %c0_45 = arith.constant 0 : index
    %c0_46 = arith.constant 0 : index
    %130 = vector.load %arg4[%c0_45, %c0_46] : memref<32x64xbf16, #tpu.memory_space<vmem>>, vector<32x64xbf16>
    %cst_47 = arith.constant dense<0.000000e+00> : vector<8x64xf32>
    %131 = tpu.matmul %129, %130, %cst_47 {dimension_numbers = #tpu.dot_dimension_numbers<[1], [0], [0], [1], [0, 0, 1, 1], [], []>} : vector<8x32xbf16>, vector<32x64xbf16>, vector<8x64xf32> -> vector<8x64xf32>
    %c1_48 = arith.constant 1 : index
    %c0_49 = arith.constant 0 : index
    %132 = vector.load %arg6[%c1_48, %c0_49] : memref<8x96xf32, #tpu.memory_space<vmem>>, vector<1x64xf32>
    %133 = vector.broadcast %132 : vector<1x64xf32> to vector<8x64xf32>
    %134 = arith.addf %131, %133 : vector<8x64xf32>
    %cst_50 = arith.constant 5.000000e-01 : f32
    %135 = vector.broadcast %cst_50 : f32 to vector<8x64xf32>
    %136 = arith.mulf %135, %134 : vector<8x64xf32>
    %cst_51 = arith.constant 0.707106769 : f32
    %137 = vector.broadcast %cst_51 : f32 to vector<8x64xf32>
    %138 = arith.mulf %134, %137 : vector<8x64xf32>
    %139 = math.erf %138 : vector<8x64xf32>
    %cst_52 = arith.constant 1.000000e+00 : f32
    %140 = vector.broadcast %cst_52 : f32 to vector<8x64xf32>
    %141 = arith.addf %140, %139 : vector<8x64xf32>
    %142 = arith.mulf %136, %141 : vector<8x64xf32>
    %143 = arith.truncf %142 : vector<8x64xf32> to vector<8x64xbf16>
    %c0_53 = arith.constant 0 : index
    %c0_54 = arith.constant 0 : index
    %144 = vector.load %arg5[%c0_53, %c0_54] : memref<64x32xbf16, #tpu.memory_space<vmem>>, vector<64x32xbf16>
    %cst_55 = arith.constant dense<0.000000e+00> : vector<8x32xf32>
    %145 = tpu.matmul %143, %144, %cst_55 {dimension_numbers = #tpu.dot_dimension_numbers<[1], [0], [0], [1], [0, 0, 1, 1], [], []>} : vector<8x64xbf16>, vector<64x32xbf16>, vector<8x32xf32> -> vector<8x32xf32>
    %c3_56 = arith.constant 3 : index
    %c0_57 = arith.constant 0 : index
    %146 = vector.load %arg6[%c3_56, %c0_57] : memref<8x96xf32, #tpu.memory_space<vmem>>, vector<1x32xf32>
    %147 = vector.broadcast %146 : vector<1x32xf32> to vector<8x32xf32>
    %148 = arith.addf %145, %147 : vector<8x32xf32>
    %149 = arith.addf %128, %148 : vector<8x32xf32>
    %c6 = arith.constant 6 : index
    %c0_58 = arith.constant 0 : index
    %150 = vector.load %arg6[%c6, %c0_58] : memref<8x96xf32, #tpu.memory_space<vmem>>, vector<1x32xf32>
    %c7 = arith.constant 7 : index
    %c0_59 = arith.constant 0 : index
    %151 = vector.load %arg6[%c7, %c0_59] : memref<8x96xf32, #tpu.memory_space<vmem>>, vector<1x32xf32>
    %cst_60 = arith.constant dense<0.000000e+00> : vector<8xf32>
    %152 = vector.multi_reduction <add>, %149, %cst_60 [1] : vector<8x32xf32> to vector<8xf32>
    %153 = vector.shape_cast %152 : vector<8xf32> to vector<8x1xf32>
    %cst_61 = arith.constant 3.200000e+01 : f32
    %154 = vector.broadcast %cst_61 : f32 to vector<8x1xf32>
    %155 = arith.divf %153, %154 : vector<8x1xf32>
    %156 = vector.broadcast %155 : vector<8x1xf32> to vector<8x32xf32>
    %157 = arith.subf %149, %156 : vector<8x32xf32>
    %158 = arith.mulf %157, %157 : vector<8x32xf32>
    %cst_62 = arith.constant dense<0.000000e+00> : vector<8xf32>
    %159 = vector.multi_reduction <add>, %158, %cst_62 [1] : vector<8x32xf32> to vector<8xf32>
    %160 = vector.shape_cast %159 : vector<8xf32> to vector<8x1xf32>
    %cst_63 = arith.constant 3.200000e+01 : f32
    %161 = vector.broadcast %cst_63 : f32 to vector<8x1xf32>
    %162 = arith.divf %160, %161 : vector<8x1xf32>
    %163 = vector.broadcast %155 : vector<8x1xf32> to vector<8x32xf32>
    %164 = arith.subf %149, %163 : vector<8x32xf32>
    %cst_64 = arith.constant 9.99999974E-6 : f32
    %165 = vector.broadcast %cst_64 : f32 to vector<8x1xf32>
    %166 = arith.addf %162, %165 : vector<8x1xf32>
    %167 = math.rsqrt %166 : vector<8x1xf32>
    %168 = vector.broadcast %167 : vector<8x1xf32> to vector<8x32xf32>
    %169 = arith.mulf %164, %168 : vector<8x32xf32>
    %170 = vector.broadcast %150 : vector<1x32xf32> to vector<8x32xf32>
    %171 = arith.mulf %169, %170 : vector<8x32xf32>
    %172 = vector.broadcast %151 : vector<1x32xf32> to vector<8x32xf32>
    %173 = arith.addf %171, %172 : vector<8x32xf32>
    %c0_65 = arith.constant 0 : index
    %c0_66 = arith.constant 0 : index
    %c0_67 = arith.constant 0 : index
    %174 = vector.load %arg7[%c0_65, %c0_66, %c0_67] : memref<1x8x32xf32, #tpu.memory_space<vmem>>, vector<1x8x32xf32>
    %175 = vector.shape_cast %174 : vector<1x8x32xf32> to vector<8x32xf32>
    %176 = vector.shape_cast %173 : vector<8x32xf32> to vector<1x8x32xf32>
    tpu.vector_store %arg7[%c0_65, %c0_66, %c0_67], %176 {strides = array<i32>} : memref<1x8x32xf32, #tpu.memory_space<vmem>>, vector<1x8x32xf32>,
    return
  }
  func.func @transform_0(%arg0: i32) -> (i32, i32, i32) {
    %c0_i32 = arith.constant 0 : i32
    %c0_i32_0 = arith.constant 0 : i32
    %c0_i32_1 = arith.constant 0 : i32
    return %arg0, %c0_i32, %c0_i32_0 : i32, i32, i32
  }
  func.func @transform_1(%arg0: i32) -> (i32, i32) {
    %c0_i32 = arith.constant 0 : i32
    %c0_i32_0 = arith.constant 0 : i32
    %c0_i32_1 = arith.constant 0 : i32
    return %c0_i32, %c0_i32_0 : i32, i32
  }
  func.func @transform_2(%arg0: i32) -> (i32, i32, i32) {
    %c0_i32 = arith.constant 0 : i32
    %c0_i32_0 = arith.constant 0 : i32
    %c0_i32_1 = arith.constant 0 : i32
    %c0_i32_2 = arith.constant 0 : i32
    return %c0_i32, %c0_i32_0, %c0_i32_1 : i32, i32, i32
  }
  func.func @transform_3(%arg0: i32) -> (i32, i32) {
    %c0_i32 = arith.constant 0 : i32
    %c0_i32_0 = arith.constant 0 : i32
    %c0_i32_1 = arith.constant 0 : i32
    return %c0_i32, %c0_i32_0 : i32, i32
  }
  func.func @transform_4(%arg0: i32) -> (i32, i32) {
    %c0_i32 = arith.constant 0 : i32
    %c0_i32_0 = arith.constant 0 : i32
    %c0_i32_1 = arith.constant 0 : i32
    return %c0_i32, %c0_i32_0 : i32, i32
  }
  func.func @transform_5(%arg0: i32) -> (i32, i32) {
    %c0_i32 = arith.constant 0 : i32
    %c0_i32_0 = arith.constant 0 : i32
    %c0_i32_1 = arith.constant 0 : i32
    return %c0_i32, %c0_i32_0 : i32, i32
  }
  func.func @transform_6(%arg0: i32) -> (i32, i32, i32) {
    %c0_i32 = arith.constant 0 : i32
    %c0_i32_0 = arith.constant 0 : i32
    %c0_i32_1 = arith.constant 0 : i32
    return %arg0, %c0_i32, %c0_i32_0 : i32, i32, i32
  }
}

</mosaic_0001>

<llo_original>
// kernel: tpu_custom_call.1
$region0: #{tpu_custom_call.1}
  #allocation0 [shape = 'u32[]', space=smem, size = 0x4, offset = 0x4, fixed_abs, tag = 'smem constant byte address 0x4 - core index']
  #allocation1 [shape = 'u32[72,128]{1,0:T(1,128)}', space=vmem, size = 0x9000, scoped, tag = 'internal scratch']
  %s0 = inlined_call_operand.vmem [shape: f32[2,8,32], index: 0, kind: input, shape index: {}]
  %s1 = inlined_call_operand.vmem [shape: bf16[32,96], index: 1, kind: input, shape index: {}]
  %s2 = inlined_call_operand.vmem [shape: bf16[4,8,32], index: 2, kind: input, shape index: {}]
  %s3 = inlined_call_operand.hbm [shape: bf16[32,64], index: 3, kind: input, shape index: {}]
  %s4 = inlined_call_operand.vmem [shape: bf16[64,32], index: 4, kind: input, shape index: {}]
  %s5 = inlined_call_operand.hbm [shape: f32[8,96], index: 5, kind: input, shape index: {}]
  %s6 = inlined_call_operand.hbm [shape: f32[2,8,32], index: 6, kind: output, shape index: {}]
  %s7 = sld [smem:[#allocation0]]
  $region65: #{tpu_custom_call.1} parent=0
    _
  %s9 = ssub.s32 1, %s7
  %s10 = scalar_select 0, %s9, %s7
  $region1: #{tpu_custom_call.1} parent=0
    #allocation2 [shape = 'u8[8192]{0}', space=vmem, size = 0x2000, scoped, tag = 'input window, operand 3, single buffered']
    #allocation3 [shape = 's32[2]{0}', space=sflag, size = 0x8, scoped, tag = 'scoped memory for tpu_custom_call.1']
    #allocation4 [shape = 's32[2]{0}', space=sflag, size = 0x8, scoped, tag = 'scoped memory for tpu_custom_call.1']
    #allocation5 [shape = 'u8[4096]{0}', space=vmem, size = 0x1000, scoped, tag = 'input window, operand 5, single buffered']
    #allocation6 [shape = 's32[1]{0}', space=sflag, size = 0x4, scoped, tag = 'scoped memory for tpu_custom_call.1']
    #allocation7 [shape = 'u8[8192]{0}', space=vmem, size = 0x2000, scoped, tag = 'output window, operand 0']
    %11 = vsyncpa [#allocation3], 0
    %12 = vsyncpa [#allocation6], 0
    %13 = vsyncpa [#allocation4], 0
    %s14 = scalar_lea.sflag [#allocation4], 1
    %15 = vsyncpa %s14, 0
    loop: start=0, step=1, limit=4
    $region2: #{tpu_custom_call.1} parent=1 // loop_pre_header
      _
    $region3: #{tpu_custom_call.1} parent=1 // loop_header
      %s17 = sphi 0, %s21
      %p18 = scmp.ge.s32.totalorder %s17, 4
      %s27 = sphi 0, %s29
      %s30 = sphi 0, %s27
      %s31 = sphi 0, %s30
      %s47 = sphi 0, %s31
      %s51 = sphi 0, %s51
      %s53 = sphi 0, %s51
      %s54 = sphi 0, %s53
      %s68 = sphi 0, %s54
      %s72 = sphi 0, %s72
      %s74 = sphi 0, %s72
      %s75 = sphi 0, %s74
      %s89 = sphi 0, %s75
      %s93 = sphi 0, %s93
      %s95 = sphi 0, %s93
      %s96 = sphi 0, %s95
      %s110 = sphi 0, %s96
      %s114 = sphi 0, %s114
      %s116 = sphi 0, %s114
      %s117 = sphi 0, %s116
      %s131 = sphi 0, %s117
      %s135 = sphi 0, %s135
      %s137 = sphi 0, %s135
      %s138 = sphi 0, %s137
      %s152 = sphi 0, %s138
      %s158 = sphi 0, %s160
      %s161 = sphi 0, %s158
      %s162 = sphi 0, %s161
      %s178 = sphi 0, %s162
    $region4: #{tpu_custom_call.1} parent=1 // loop_header_branch
      %20 = sbr.rel (%p18) target = $region8
    $region5: #{tpu_custom_call.1} parent=1 // loop_body
      %s22 = ssub.s32 %s17, 1
      %s23 = ssub.s32 %s17, 2
      %s24 = sadd.s32 %s17, 1
      %s25 = ssub.s32 %s17, %s24
      %p26 = scmp.eq.s32.totalorder %s25, 0
      %s28 = sadd.s32 %s27, 1
      %s29 = scalar_select %p26, %s27, %s28
      %p32 = pneg %p26
      %p33 = scmp.eq.s32.totalorder %s17, 1
      %p34 = por %p32, %p33
      %p35 = scmp.ne.s32.totalorder %s27, %s30
      %p36 = scmp.eq.s32.totalorder %s17, 0
      %p37 = por %p35, %p36
      %p38 = scmp.ne.s32.totalorder %s27, %s30
      %p39 = scmp.eq.s32.totalorder %s22, 1
      %p40 = por %p38, %p39
      %p41 = scmp.ne.s32.totalorder %s30, %s31
      %p42 = scmp.eq.s32.totalorder %s22, 0
      %p43 = por %p41, %p42
      %p44 = scmp.ne.s32.totalorder %s30, %s31
      %p45 = scmp.eq.s32.totalorder %s23, 1
      %p46 = por %p44, %p45
      %p48 = scmp.ne.s32.totalorder %s31, %s47
      %p49 = scmp.eq.s32.totalorder %s23, 0
      %p50 = por %p48, %p49
      %s52 = sadd.s32 %s51, 1
      %p55 = scmp.eq.s32.totalorder %s17, 1
      %p56 = scmp.ne.s32.totalorder %s51, %s53
      %p57 = scmp.eq.s32.totalorder %s17, 0
      %p58 = por %p56, %p57
      %p59 = scmp.ne.s32.totalorder %s51, %s53
      %p60 = scmp.eq.s32.totalorder %s22, 1
      %p61 = por %p59, %p60
      %p62 = scmp.ne.s32.totalorder %s53, %s54
      %p63 = scmp.eq.s32.totalorder %s22, 0
      %p64 = por %p62, %p63
      %p65 = scmp.ne.s32.totalorder %s53, %s54
      %p66 = scmp.eq.s32.totalorder %s23, 1
      %p67 = por %p65, %p66
      %p69 = scmp.ne.s32.totalorder %s54, %s68
      %p70 = scmp.eq.s32.totalorder %s23, 0
      %p71 = por %p69, %p70
      %s73 = sadd.s32 %s72, 1
      %p76 = scmp.eq.s32.totalorder %s17, 1
      %p77 = scmp.ne.s32.totalorder %s72, %s74
      %p78 = scmp.eq.s32.totalorder %s17, 0
      %p79 = por %p77, %p78
      %p80 = scmp.ne.s32.totalorder %s72, %s74
      %p81 = scmp.eq.s32.totalorder %s22, 1
      %p82 = por %p80, %p81
      %p83 = scmp.ne.s32.totalorder %s74, %s75
      %p84 = scmp.eq.s32.totalorder %s22, 0
      %p85 = por %p83, %p84
      %p86 = scmp.ne.s32.totalorder %s74, %s75
      %p87 = scmp.eq.s32.totalorder %s23, 1
      %p88 = por %p86, %p87
      %p90 = scmp.ne.s32.totalorder %s75, %s89
      %p91 = scmp.eq.s32.totalorder %s23, 0
      %p92 = por %p90, %p91
      %s94 = sadd.s32 %s93, 1
      %p97 = scmp.eq.s32.totalorder %s17, 1
      %p98 = scmp.ne.s32.totalorder %s93, %s95
      %p99 = scmp.eq.s32.totalorder %s17, 0
      %p100 = por %p98, %p99
      %p101 = scmp.ne.s32.totalorder %s93, %s95
      %p102 = scmp.eq.s32.totalorder %s22, 1
      %p103 = por %p101, %p102
      %p104 = scmp.ne.s32.totalorder %s95, %s96
      %p105 = scmp.eq.s32.totalorder %s22, 0
      %p106 = por %p104, %p105
      %p107 = scmp.ne.s32.totalorder %s95, %s96
      %p108 = scmp.eq.s32.totalorder %s23, 1
      %p109 = por %p107, %p108
      %p111 = scmp.ne.s32.totalorder %s96, %s110
      %p112 = scmp.eq.s32.totalorder %s23, 0
      %p113 = por %p111, %p112
      %s115 = sadd.s32 %s114, 1
      %p118 = scmp.eq.s32.totalorder %s17, 1
      %p119 = scmp.ne.s32.totalorder %s114, %s116
      %p120 = scmp.eq.s32.totalorder %s17, 0
      %p121 = por %p119, %p120
      %p122 = scmp.ne.s32.totalorder %s114, %s116
      %p123 = scmp.eq.s32.totalorder %s22, 1
      %p124 = por %p122, %p123
      %p125 = scmp.ne.s32.totalorder %s116, %s117
      %p126 = scmp.eq.s32.totalorder %s22, 0
      %p127 = por %p125, %p126
      %p128 = scmp.ne.s32.totalorder %s116, %s117
      %p129 = scmp.eq.s32.totalorder %s23, 1
      %p130 = por %p128, %p129
      %p132 = scmp.ne.s32.totalorder %s117, %s131
      %p133 = scmp.eq.s32.totalorder %s23, 0
      %p134 = por %p132, %p133
      %s136 = sadd.s32 %s135, 1
      %p139 = scmp.eq.s32.totalorder %s17, 1
      %p140 = scmp.ne.s32.totalorder %s135, %s137
      %p141 = scmp.eq.s32.totalorder %s17, 0
      %p142 = por %p140, %p141
      %p143 = scmp.ne.s32.totalorder %s135, %s137
      %p144 = scmp.eq.s32.totalorder %s22, 1
      %p145 = por %p143, %p144
      %p146 = scmp.ne.s32.totalorder %s137, %s138
      %p147 = scmp.eq.s32.totalorder %s22, 0
      %p148 = por %p146, %p147
      %p149 = scmp.ne.s32.totalorder %s137, %s138
      %p150 = scmp.eq.s32.totalorder %s23, 1
      %p151 = por %p149, %p150
      %p153 = scmp.ne.s32.totalorder %s138, %s152
      %p154 = scmp.eq.s32.totalorder %s23, 0
      %p155 = por %p153, %p154
      %s156 = ssub.s32 %s17, %s24
      %p157 = scmp.eq.s32.totalorder %s156, 0
      %s159 = sadd.s32 %s158, 1
      %s160 = scalar_select %p157, %s158, %s159
      %p163 = pneg %p157
      %p164 = scmp.eq.s32.totalorder %s17, 1
      %p165 = por %p163, %p164
      %p166 = scmp.ne.s32.totalorder %s158, %s161
      %p167 = scmp.eq.s32.totalorder %s17, 0
      %p168 = por %p166, %p167
      %p169 = scmp.ne.s32.totalorder %s158, %s161
      %p170 = scmp.eq.s32.totalorder %s22, 1
      %p171 = por %p169, %p170
      %p172 = scmp.ne.s32.totalorder %s161, %s162
      %p173 = scmp.eq.s32.totalorder %s22, 0
      %p174 = por %p172, %p173
      %p175 = scmp.ne.s32.totalorder %s161, %s162
      %p176 = scmp.eq.s32.totalorder %s23, 1
      %p177 = por %p175, %p176
      %p179 = scmp.ne.s32.totalorder %s162, %s178
      %p180 = scmp.eq.s32.totalorder %s23, 0
      %p181 = por %p179, %p180
      %p182 = scmp.le.s32.totalorder 1, %s17
      %p183 = scmp.lt.s32.totalorder %s17, 3
      %p184 = pnand %p182, %p183
      %p185 = pneg %p184
      // Predicated region
      $region9: #{tpu_custom_call.1} parent=5 // pred_check
        _
      $region10: #{tpu_custom_call.1} parent=5 // pred_check_branch
        %187 = sbr.rel (%p184) target = $region12
      $region11: #{tpu_custom_call.1} parent=5 // pred_region
        %s188 = ssub.s32 %s17, 1
        // Predicated region
        $region13: #{tpu_custom_call.1} parent=11 // pred_check
          %p189 = pneg %p64
        $region14: #{tpu_custom_call.1} parent=11 // pred_check_branch
          %191 = sbr.rel (%p189) target = $region16
        $region15: #{tpu_custom_call.1} parent=11 // pred_region
          _
        $region16: #{tpu_custom_call.1} parent=11 // pred_fallthru
          _
        // Predicated region
        $region17: #{tpu_custom_call.1} parent=11 // pred_check
          %p192 = pneg %p85
        $region18: #{tpu_custom_call.1} parent=11 // pred_check_branch
          %194 = sbr.rel (%p192) target = $region20
        $region19: #{tpu_custom_call.1} parent=11 // pred_region
          _
        $region20: #{tpu_custom_call.1} parent=11 // pred_fallthru
          _
        // Predicated region
        $region21: #{tpu_custom_call.1} parent=11 // pred_check
          %p195 = pneg %p106
        $region22: #{tpu_custom_call.1} parent=11 // pred_check_branch
          %197 = sbr.rel (%p195) target = $region24
        $region23: #{tpu_custom_call.1} parent=11 // pred_region
          %199 = vsyncadd [#allocation3], 0
          %s200 = sshll.u32 %s3, 4
          %s201 = int_to_ptr.hbm [resolvable:$true] %s200
          %s202 = sshll.u32 [#allocation2], 4
          %s203 = int_to_ptr.vmem [resolvable:$true] %s202
          %208 = dma.hbm_to_vmem [thread:$0]  %s201, 256, %s203, [#allocation3], 64, 64, 4
        $region24: #{tpu_custom_call.1} parent=11 // pred_fallthru
          _
        // Predicated region
        $region25: #{tpu_custom_call.1} parent=11 // pred_check
          %p209 = pneg %p127
        $region26: #{tpu_custom_call.1} parent=11 // pred_check_branch
          %211 = sbr.rel (%p209) target = $region28
        $region27: #{tpu_custom_call.1} parent=11 // pred_region
          _
        $region28: #{tpu_custom_call.1} parent=11 // pred_fallthru
          _
        // Predicated region
        $region29: #{tpu_custom_call.1} parent=11 // pred_check
          %p212 = pneg %p148
        $region30: #{tpu_custom_call.1} parent=11 // pred_check_branch
          %214 = sbr.rel (%p212) target = $region32
        $region31: #{tpu_custom_call.1} parent=11 // pred_region
          %216 = vsyncadd [#allocation6], 0
          %s218 = sshll.u32 %s5, 4
          %s219 = int_to_ptr.hbm [resolvable:$true] %s218
          %s220 = sshll.u32 [#allocation5], 4
          %s221 = int_to_ptr.vmem [resolvable:$true] %s220
          %223 = dma.hbm_to_vmem [thread:$0]  %s219, 128, %s221, [#allocation6]
        $region32: #{tpu_custom_call.1} parent=11 // pred_fallthru
          _
      $region12: #{tpu_custom_call.1} parent=5 // pred_fallthru
        _
      %p224 = scmp.lt.s32.totalorder %s17, 2
      // Predicated region
      $region33: #{tpu_custom_call.1} parent=5 // pred_check
        %p225 = pneg %p224
      $region34: #{tpu_custom_call.1} parent=5 // pred_check_branch
        %227 = sbr.rel (%p225) target = $region36
      $region35: #{tpu_custom_call.1} parent=5 // pred_region
        // Predicated region
        $region37: #{tpu_custom_call.1} parent=35 // pred_check
          %p228 = pneg %p37
        $region38: #{tpu_custom_call.1} parent=35 // pred_check_branch
          %230 = sbr.rel (%p228) target = $region40
        $region39: #{tpu_custom_call.1} parent=35 // pred_region
          %p231 = scmp.lt.s32.totalorder %s17, 1
          %s232 = scalar_select %p231, %s17, 1
          %s233 = smul.addr %s232, 8
          %s234 = scalar_lea.vmem %s0, %s233
        $region40: #{tpu_custom_call.1} parent=35 // pred_fallthru
          _
      $region36: #{tpu_custom_call.1} parent=5 // pred_fallthru
        _
      %p235 = scmp.le.s32.totalorder 1, %s17
      %p236 = scmp.lt.s32.totalorder %s17, 3
      %p237 = pnand %p235, %p236
      %p238 = pneg %p237
      // Predicated region
      $region41: #{tpu_custom_call.1} parent=5 // pred_check
        _
      $region42: #{tpu_custom_call.1} parent=5 // pred_check_branch
        %240 = sbr.rel (%p237) target = $region44
      $region43: #{tpu_custom_call.1} parent=5 // pred_region
        %s241 = ssub.s32 %s17, 1
        // Predicated region
        $region45: #{tpu_custom_call.1} parent=43 // pred_check
          %p242 = pneg %p106
        $region46: #{tpu_custom_call.1} parent=43 // pred_check_branch
          %244 = sbr.rel (%p242) target = $region48
        $region47: #{tpu_custom_call.1} parent=43 // pred_region
          %246 = dma.done [#allocation3], 256
        $region48: #{tpu_custom_call.1} parent=43 // pred_fallthru
          _
        // Predicated region
        $region49: #{tpu_custom_call.1} parent=43 // pred_check
          %p247 = pneg %p148
        $region50: #{tpu_custom_call.1} parent=43 // pred_check_branch
          %249 = sbr.rel (%p247) target = $region52
        $region51: #{tpu_custom_call.1} parent=43 // pred_region
          %251 = dma.done [#allocation6], 128
        $region52: #{tpu_custom_call.1} parent=43 // pred_fallthru
          _
        %p252 = scmp.lt.s32.totalorder %s22, 1
        %s253 = scalar_select %p252, %s22, 1
        %s254 = smul.addr %s253, 8
        %s255 = scalar_lea.vmem %s0, %s254
        %p256 = pneg %p43
        %p257 = pneg %p40
        %p258 = pneg %p64
        %p259 = pneg %p61
        %p260 = pneg %p85
        %p261 = pneg %p82
        %p262 = pneg %p106
        %p263 = pneg %p103
        %p264 = pneg %p127
        %p265 = pneg %p124
        %p266 = pneg %p148
        %p267 = pneg %p145
        %p268 = pneg %p174
        %p269 = pneg %p171
        %s270 = sand.u32 %s161, 1
        %s271 = scalar_lea.sflag [#allocation4], %s270
        %s272 = sand.u32 %s161, 1
        %s273 = smul.addr %s272, 8
        %s274 = scalar_lea.vmem [#allocation7], %s273
        %p275 = scmp.lt.s32.totalorder %s22, 1
        %s276 = scalar_select %p275, %s22, 1
        %s277 = smul.addr %s276, 8
        %s278 = scalar_lea.vmem %s0, %s277
        %v280 = vld [vmem:[%s278] sm:$0xff]
        %v281 = vpack.c.bf16 %v280, %v280
        %v282 = vld [vmem:[%s1] sm:$0xf]
        %v283 = vld [vmem:[%s1 + $0x4] sm:$0xf]
        %v284 = vld [vmem:[%s1 + $0x8] sm:$0xf]
        %v285 = vld [vmem:[%s1 + $0xc] sm:$0xf]
        %v286 = vld [vmem:[#allocation5] sm:$0x1]
        %v287 = vperm.slane %v286, 0
        %v292 = vunpack.c.l.b16 %v282
        %v293 = vunpack.c.l.b16 %v283
        %v294 = vunpack.c.l.b16 %v284
        %v295 = vunpack.c.l.b16 %v285
        %v296 = vpack.c.b16 %v293, %v292
        %v297 = vpack.c.b16 %v295, %v294
        %vm300 = vcmask 261120
        %v302 = vsel %vm300, %v281, 0
        %304 = vmatpush.bf16.msra.mxu0 0
        %305 = vmatpush.bf16.msra.mxu0 0
        %306 = vmatpush.bf16.msra.mxu0 0
        %307 = vmatpush.bf16.msra.mxu0 0
        %308 = vmatpush.bf16.msra.mxu0 0
        %309 = vmatpush.bf16.msra.mxu0 0
        %310 = vmatpush.bf16.msra.mxu0 %v297
        %311 = vmatpush.bf16.msra.mxu0 %v296
        %312 = vmatmul.bf16.gmra.mxu0 %v302
        %v313 = vpop.f32.mrf.mxu0
        %v314 = vadd.f32 %v287, %v313
        %v315 = vpop.f32.mrf.mxu0
        %316 = vdwg.mxu0
        %v317 = vpack.c.bf16 %v314, %v314
        %v319 = vunpack.c.l.b16 %v317
        %v320 = vpack.c.b16 %v319, %v319
        %321 = vrot.lane.b32.xlu0 %v320, 96
        %v322 = vpop.permute.xlu0 %321
        %vm323 = vcmask 64512
        %v325 = vsel %vm323, %v317, 0
        %v328 = vsel %vm323, %v322, 0
        %330 = vmatpush.bf16.xpose.msra.mxu0 0
        %331 = vmatpush.bf16.xpose.msra.mxu0 0
        %332 = vmatpush.bf16.xpose.msra.mxu0 0
        %333 = vmatpush.bf16.xpose.msra.mxu0 0
        %334 = vmatpush.bf16.xpose.msra.mxu0 0
        %335 = vmatpush.bf16.xpose.msra.mxu0 0
        %336 = vmatpush.bf16.xpose.msra.mxu0 0
        %337 = vmatpush.bf16.xpose.msra.mxu0 %v328
        %338 = vmatmul.bf16.gmra.mxu0 %v325
        %v339 = vpop.f32.mrf.mxu0
        %v340 = vadd.f32 0.0, %v339
        %v341 = vpop.f32.mrf.mxu0
        %342 = vdwg.mxu0
        %v343 = vsel %vm323, %v340, -inf
        %344 = vmax.xlane.f32.xlu0 %v343
        %v345 = vpop.xlane.xlu0 %344
        %v346 = vsub.f32 %v340, %v345
        %v347 = vmul.f32 %v346, 1.442695
        %v348 = vpow.pop %v347
        %v349 = vsel %vm323, %v348, 0.0
        %350 = vadd.xlane.f32.xlu0 %v349
        %v351 = vpop.xlane.xlu0 %350
        %v352 = vrcp.pop %v351
        %v353 = vmul.f32 %v348, %v352
        %v354 = vpack.c.bf16 %v353, %v353
        %355 = vrot.lane.b32.xlu0 %v320, 64
        %v356 = vpop.permute.xlu0 %355
        %v358 = vsel %vm323, %v354, 0
        %vm360 = vcmask 1043456
        %v362 = vsel %vm360, %v356, 0
        %364 = vmatpush.bf16.msra.mxu0 0
        %365 = vmatpush.bf16.msra.mxu0 0
        %366 = vmatpush.bf16.msra.mxu0 0
        %367 = vmatpush.bf16.msra.mxu0 0
        %368 = vmatpush.bf16.msra.mxu0 0
        %369 = vmatpush.bf16.msra.mxu0 0
        %370 = vmatpush.bf16.msra.mxu0 0
        %371 = vmatpush.bf16.msra.mxu0 %v362
        %372 = vmatmul.bf16.gmra.mxu0 %v358
        %v373 = vpop.f32.mrf.mxu0
        %v374 = vadd.f32 0.0, %v373
        %v375 = vpop.f32.mrf.mxu0
        %376 = vdwg.mxu0
        %v377 = vpack.c.bf16 %v374, %v374
        %v378 = vld [vmem:[%s2] sm:$0xf]
        %379 = vrot.lane.b32.xlu0 %v320, 120
        %v380 = vpop.permute.xlu0 %379
        %381 = vrot.lane.b32.xlu0 %v320, 88
        %v382 = vpop.permute.xlu0 %381
        %v384 = vsel %vm323, %v380, 0
        %v387 = vsel %vm323, %v382, 0
        %389 = vmatpush.bf16.xpose.msra.mxu0 0
        %390 = vmatpush.bf16.xpose.msra.mxu0 0
        %391 = vmatpush.bf16.xpose.msra.mxu0 0
        %392 = vmatpush.bf16.xpose.msra.mxu0 0
        %393 = vmatpush.bf16.xpose.msra.mxu0 0
        %394 = vmatpush.bf16.xpose.msra.mxu0 0
        %395 = vmatpush.bf16.xpose.msra.mxu0 0
        %396 = vmatpush.bf16.xpose.msra.mxu0 %v387
        %397 = vmatmul.bf16.gmra.mxu0 %v384
        %v398 = vpop.f32.mrf.mxu0
        %v399 = vadd.f32 0.0, %v398
        %v400 = vpop.f32.mrf.mxu0
        %401 = vdwg.mxu0
        %v402 = vsel %vm323, %v399, -inf
        %403 = vmax.xlane.f32.xlu0 %v402
        %v404 = vpop.xlane.xlu0 %403
        %v405 = vsub.f32 %v399, %v404
        %v406 = vmul.f32 %v405, 1.442695
        %v407 = vpow.pop %v406
        %v408 = vsel %vm323, %v407, 0.0
        %409 = vadd.xlane.f32.xlu0 %v408
        %v410 = vpop.xlane.xlu0 %409
        %v411 = vrcp.pop %v410
        %v412 = vmul.f32 %v407, %v411
        %v413 = vpack.c.bf16 %v412, %v412
        %414 = vrot.lane.b32.xlu0 %v320, 56
        %v415 = vpop.permute.xlu0 %414
        %v417 = vsel %vm323, %v413, 0
        %v420 = vsel %vm360, %v415, 0
        %422 = vmatpush.bf16.msra.mxu0 0
        %423 = vmatpush.bf16.msra.mxu0 0
        %424 = vmatpush.bf16.msra.mxu0 0
        %425 = vmatpush.bf16.msra.mxu0 0
        %426 = vmatpush.bf16.msra.mxu0 0
        %427 = vmatpush.bf16.msra.mxu0 0
        %428 = vmatpush.bf16.msra.mxu0 0
        %429 = vmatpush.bf16.msra.mxu0 %v420
        %430 = vmatmul.bf16.gmra.mxu0 %v417
        %v431 = vpop.f32.mrf.mxu0
        %v432 = vadd.f32 0.0, %v431
        %v433 = vpop.f32.mrf.mxu0
        %434 = vdwg.mxu0
        %v435 = vpack.c.bf16 %v432, %v432
        %s436 = scalar_lea.vmem %s2, 4
        %v437 = vld [vmem:[%s436] sm:$0xf]
        %v439 = vsel %vm323, %v435, 0
        %v442 = vsel %vm360, %v437, 0
        %444 = vmatpush.bf16.msra.mxu0 0
        %445 = vmatpush.bf16.msra.mxu0 0
        %446 = vmatpush.bf16.msra.mxu0 0
        %447 = vmatpush.bf16.msra.mxu0 0
        %448 = vmatpush.bf16.msra.mxu0 0
        %449 = vmatpush.bf16.msra.mxu0 0
        %450 = vmatpush.bf16.msra.mxu0 0
        %451 = vmatpush.bf16.msra.mxu0 %v442
        %452 = vmatmul.bf16.gmra.mxu0 %v439
        %v453 = vpop.f32.mrf.mxu0
        %v454 = vadd.f32 0.0, %v453
        %v455 = vpop.f32.mrf.mxu0
        %456 = vdwg.mxu0
        %v458 = vsel %vm323, %v377, 0
        %v461 = vsel %vm360, %v378, 0
        %463 = vmatpush.bf16.msra.mxu0 0
        %464 = vmatpush.bf16.msra.mxu0 0
        %465 = vmatpush.bf16.msra.mxu0 0
        %466 = vmatpush.bf16.msra.mxu0 0
        %467 = vmatpush.bf16.msra.mxu0 0
        %468 = vmatpush.bf16.msra.mxu0 0
        %469 = vmatpush.bf16.msra.mxu0 0
        %470 = vmatpush.bf16.msra.mxu0 %v461
        %471 = vmatmul.bf16.gmra.mxu0 %v458
        %v472 = vpop.f32.mrf.mxu0
        %v473 = vadd.f32 %v454, %v472
        %v474 = vpop.f32.mrf.mxu0
        %475 = vdwg.mxu0
        %476 = vrot.lane.b32.xlu0 %v320, 112
        %v477 = vpop.permute.xlu0 %476
        %478 = vrot.lane.b32.xlu0 %v320, 80
        %v479 = vpop.permute.xlu0 %478
        %v481 = vsel %vm323, %v477, 0
        %v484 = vsel %vm323, %v479, 0
        %486 = vmatpush.bf16.xpose.msra.mxu0 0
        %487 = vmatpush.bf16.xpose.msra.mxu0 0
        %488 = vmatpush.bf16.xpose.msra.mxu0 0
        %489 = vmatpush.bf16.xpose.msra.mxu0 0
        %490 = vmatpush.bf16.xpose.msra.mxu0 0
        %491 = vmatpush.bf16.xpose.msra.mxu0 0
        %492 = vmatpush.bf16.xpose.msra.mxu0 0
        %493 = vmatpush.bf16.xpose.msra.mxu0 %v484
        %494 = vmatmul.bf16.gmra.mxu0 %v481
        %v495 = vpop.f32.mrf.mxu0
        %v496 = vadd.f32 0.0, %v495
        %v497 = vpop.f32.mrf.mxu0
        %498 = vdwg.mxu0
        %v499 = vsel %vm323, %v496, -inf
        %500 = vmax.xlane.f32.xlu0 %v499
        %v501 = vpop.xlane.xlu0 %500
        %v502 = vsub.f32 %v496, %v501
        %v503 = vmul.f32 %v502, 1.442695
        %v504 = vpow.pop %v503
        %v505 = vsel %vm323, %v504, 0.0
        %506 = vadd.xlane.f32.xlu0 %v505
        %v507 = vpop.xlane.xlu0 %506
        %v508 = vrcp.pop %v507
        %v509 = vmul.f32 %v504, %v508
        %v510 = vpack.c.bf16 %v509, %v509
        %511 = vrot.lane.b32.xlu0 %v320, 48
        %v512 = vpop.permute.xlu0 %511
        %v514 = vsel %vm323, %v510, 0
        %v517 = vsel %vm360, %v512, 0
        %519 = vmatpush.bf16.msra.mxu0 0
        %520 = vmatpush.bf16.msra.mxu0 0
        %521 = vmatpush.bf16.msra.mxu0 0
        %522 = vmatpush.bf16.msra.mxu0 0
        %523 = vmatpush.bf16.msra.mxu0 0
        %524 = vmatpush.bf16.msra.mxu0 0
        %525 = vmatpush.bf16.msra.mxu0 0
        %526 = vmatpush.bf16.msra.mxu0 %v517
        %527 = vmatmul.bf16.gmra.mxu0 %v514
        %v528 = vpop.f32.mrf.mxu0
        %v529 = vadd.f32 0.0, %v528
        %v530 = vpop.f32.mrf.mxu0
        %531 = vdwg.mxu0
        %v532 = vpack.c.bf16 %v529, %v529
        %s533 = scalar_lea.vmem %s2, 8
        %v534 = vld [vmem:[%s533] sm:$0xf]
        %v536 = vsel %vm323, %v532, 0
        %v539 = vsel %vm360, %v534, 0
        %541 = vmatpush.bf16.msra.mxu0 0
        %542 = vmatpush.bf16.msra.mxu0 0
        %543 = vmatpush.bf16.msra.mxu0 0
        %544 = vmatpush.bf16.msra.mxu0 0
        %545 = vmatpush.bf16.msra.mxu0 0
        %546 = vmatpush.bf16.msra.mxu0 0
        %547 = vmatpush.bf16.msra.mxu0 0
        %548 = vmatpush.bf16.msra.mxu0 %v539
        %549 = vmatmul.bf16.gmra.mxu0 %v536
        %v550 = vpop.f32.mrf.mxu0
        %v551 = vadd.f32 0.0, %v550
        %v552 = vpop.f32.mrf.mxu0
        %553 = vdwg.mxu0
        %v554 = vadd.f32 %v473, %v551
        %555 = vrot.lane.b32.xlu0 %v320, 104
        %v556 = vpop.permute.xlu0 %555
        %557 = vrot.lane.b32.xlu0 %v320, 72
        %v558 = vpop.permute.xlu0 %557
        %v560 = vsel %vm323, %v556, 0
        %v563 = vsel %vm323, %v558, 0
        %565 = vmatpush.bf16.xpose.msra.mxu0 0
        %566 = vmatpush.bf16.xpose.msra.mxu0 0
        %567 = vmatpush.bf16.xpose.msra.mxu0 0
        %568 = vmatpush.bf16.xpose.msra.mxu0 0
        %569 = vmatpush.bf16.xpose.msra.mxu0 0
        %570 = vmatpush.bf16.xpose.msra.mxu0 0
        %571 = vmatpush.bf16.xpose.msra.mxu0 0
        %572 = vmatpush.bf16.xpose.msra.mxu0 %v563
        %573 = vmatmul.bf16.gmra.mxu0 %v560
        %v574 = vpop.f32.mrf.mxu0
        %v575 = vadd.f32 0.0, %v574
        %v576 = vpop.f32.mrf.mxu0
        %577 = vdwg.mxu0
        %v578 = vsel %vm323, %v575, -inf
        %579 = vmax.xlane.f32.xlu0 %v578
        %v580 = vpop.xlane.xlu0 %579
        %v581 = vsub.f32 %v575, %v580
        %v582 = vmul.f32 %v581, 1.442695
        %v583 = vpow.pop %v582
        %v584 = vsel %vm323, %v583, 0.0
        %585 = vadd.xlane.f32.xlu0 %v584
        %v586 = vpop.xlane.xlu0 %585
        %v587 = vrcp.pop %v586
        %v588 = vmul.f32 %v583, %v587
        %v589 = vpack.c.bf16 %v588, %v588
        %590 = vrot.lane.b32.xlu0 %v320, 40
        %v591 = vpop.permute.xlu0 %590
        %v593 = vsel %vm323, %v589, 0
        %v596 = vsel %vm360, %v591, 0
        %598 = vmatpush.bf16.msra.mxu0 0
        %599 = vmatpush.bf16.msra.mxu0 0
        %600 = vmatpush.bf16.msra.mxu0 0
        %601 = vmatpush.bf16.msra.mxu0 0
        %602 = vmatpush.bf16.msra.mxu0 0
        %603 = vmatpush.bf16.msra.mxu0 0
        %604 = vmatpush.bf16.msra.mxu0 0
        %605 = vmatpush.bf16.msra.mxu0 %v596
        %606 = vmatmul.bf16.gmra.mxu0 %v593
        %v607 = vpop.f32.mrf.mxu0
        %v608 = vadd.f32 0.0, %v607
        %v609 = vpop.f32.mrf.mxu0
        %610 = vdwg.mxu0
        %v611 = vpack.c.bf16 %v608, %v608
        %s612 = scalar_lea.vmem %s2, 12
        %v613 = vld [vmem:[%s612] sm:$0xf]
        %v615 = vsel %vm323, %v611, 0
        %v618 = vsel %vm360, %v613, 0
        %620 = vmatpush.bf16.msra.mxu0 0
        %621 = vmatpush.bf16.msra.mxu0 0
        %622 = vmatpush.bf16.msra.mxu0 0
        %623 = vmatpush.bf16.msra.mxu0 0
        %624 = vmatpush.bf16.msra.mxu0 0
        %625 = vmatpush.bf16.msra.mxu0 0
        %626 = vmatpush.bf16.msra.mxu0 0
        %627 = vmatpush.bf16.msra.mxu0 %v618
        %628 = vmatmul.bf16.gmra.mxu0 %v615
        %v629 = vpop.f32.mrf.mxu0
        %v630 = vadd.f32 0.0, %v629
        %v631 = vpop.f32.mrf.mxu0
        %632 = vdwg.mxu0
        %v633 = vadd.f32 %v554, %v630
        %v634 = vld [vmem:[#allocation5 + $0x2] sm:$0x1]
        %v635 = vperm.slane %v634, 0
        %v636 = vadd.f32 %v633, %v635
        %v637 = vadd.f32 %v280, %v636
        %v638 = vld [vmem:[#allocation5 + $0x4] sm:$0x1]
        %v639 = vld [vmem:[#allocation5 + $0x5] sm:$0x1]
        %v640 = vsel %vm300, %v637, 0.0
        %641 = vadd.xlane.f32.xlu0 %v640
        %v642 = vpop.xlane.xlu0 %641
        %v643 = vrcp.pop 32.0
        %v644 = vmul.f32 32.0, %v643
        %v645 = vsub.f32 1.0, %v644
        %v646 = vmul.f32 %v643, %v645
        %v647 = vadd.f32 %v643, %v646
        %vm648 = vweird.f32 %v643
        %v649 = vsel %vm648, %v643, %v647
        %v650 = vmul.f32 %v642, %v649
        %v651 = vsub.f32 %v637, %v650
        %v652 = vmul.f32 %v651, %v651
        %v653 = vsel %vm300, %v652, 0.0
        %654 = vadd.xlane.f32.xlu0 %v653
        %v655 = vpop.xlane.xlu0 %654
        %v656 = vmul.f32 %v655, %v649
        %v657 = vadd.f32 %v656, 1e-05
        %v658 = vrsqrt.pop %v657
        %v659 = vmul.f32 %v658, %v657
        %v660 = vmul.f32 %v659, %v658
        %v661 = vmul.f32 0.5, %v660
        %v662 = vsub.f32 1.5, %v661
        %v663 = vmul.f32 %v658, %v662
        %vm664 = vweird.f32 %v657
        %vm665 = vweird.f32 %v658
        %vm666 = vmor %vm664, %vm665
        %v667 = vsel %vm666, %v658, %v663
        %v668 = vmul.f32 %v651, %v667
        %v669 = vperm.slane %v638, 0
        %v670 = vmul.f32 %v668, %v669
        %v671 = vperm.slane %v639, 0
        %v672 = vadd.f32 %v670, %v671
        %v673 = vpack.c.bf16 %v672, %v672
        %v674 = vld [vmem:[#allocation2] sm:$0xf]
        %v675 = vld [vmem:[#allocation2 + $0x4] sm:$0xf]
        %v676 = vld [vmem:[#allocation2 + $0x8] sm:$0xf]
        %v677 = vld [vmem:[#allocation2 + $0xc] sm:$0xf]
        %v678 = vld [vmem:[#allocation5 + $0x1] sm:$0x1]
        %v679 = vperm.slane %v678, 0
        %v684 = vunpack.c.l.b16 %v674
        %v685 = vunpack.c.l.b16 %v675
        %v686 = vunpack.c.l.b16 %v676
        %v687 = vunpack.c.l.b16 %v677
        %v688 = vpack.c.b16 %v685, %v684
        %v689 = vpack.c.b16 %v687, %v686
        %v693 = vsel %vm300, %v673, 0
        %695 = vmatpush.bf16.msra.mxu0 0
        %696 = vmatpush.bf16.msra.mxu0 0
        %697 = vmatpush.bf16.msra.mxu0 0
        %698 = vmatpush.bf16.msra.mxu0 0
        %699 = vmatpush.bf16.msra.mxu0 0
        %700 = vmatpush.bf16.msra.mxu0 0
        %701 = vmatpush.bf16.msra.mxu0 %v689
        %702 = vmatpush.bf16.msra.mxu0 %v688
        %703 = vmatmul.bf16.gmra.mxu0 %v693
        %v704 = vpop.f32.mrf.mxu0
        %v705 = vadd.f32 %v679, %v704
        %v706 = vpop.f32.mrf.mxu0
        %707 = vdwg.mxu0
        %v708 = vmul.f32 %v705, 0.5
        %v709 = vmul.f32 %v705, 0.70710677
        %v710 = vmul.f32 %v709, %v709
        %v711 = vmin.f32 16.0, %v710
        %v712 = vmul.f32 %v711, 2.1237322e-06
        %v713 = vadd.f32 %v712, 0.00028619796
        %v714 = vmul.f32 %v711, %v713
        %v715 = vadd.f32 %v714, 0.0036580483
        %v716 = vmul.f32 %v711, %v715
        %v717 = vadd.f32 %v716, 0.05243302
        %v718 = vmul.f32 %v711, %v717
        %v719 = vadd.f32 %v718, 0.18741608
        %v720 = vmul.f32 %v711, %v719
        %v721 = vadd.f32 %v720, 1.1283791
        %v722 = vmul.f32 %v709, %v721
        %v723 = vmul.f32 %v711, 3.8918573e-05
        %v724 = vadd.f32 %v723, 0.001143296
        %v725 = vmul.f32 %v711, %v724
        %v726 = vadd.f32 %v725, 0.014752088
        %v727 = vmul.f32 %v711, %v726
        %v728 = vadd.f32 %v727, 0.112945676
        %v729 = vmul.f32 %v711, %v728
        %v730 = vadd.f32 %v729, 0.4994258
        %v731 = vmul.f32 %v711, %v730
        %v732 = vadd.f32 %v731, 1.0
        %v733 = vrcp.pop %v732
        %v734 = vmul.f32 %v732, %v733
        %v735 = vsub.f32 1.0, %v734
        %v736 = vmul.f32 %v733, %v735
        %v737 = vadd.f32 %v733, %v736
        %vm738 = vweird.f32 %v732
        %vm739 = vweird.f32 %v733
        %vm740 = vmor %vm738, %vm739
        %v741 = vsel %vm740, %v733, %v737
        %v742 = vand.u32 2147483647, %v732
        %vm743 = vcmp.eq.f32.partialorder %v742, 8.507059e+37
        %v744 = vand.u32 %v732, 2147483648
        %v745 = vor.u32 1.1754944e-38, %v744
        %v746 = vsel %vm743, %v745, %v741
        %v747 = vmul.f32 %v722, %v746
        %v748 = vmin.f32 %v747, 1.0
        %v749 = vmax.f32 %v748, -1.0
        %v750 = vadd.f32 %v749, 1.0
        %v751 = vmul.f32 %v708, %v750
        %v752 = vpack.c.bf16 %v751, %v751
        %v753 = vld [vmem:[%s4] sm:$0xf]
        %v754 = vld [vmem:[%s4 + $0x4] sm:$0xf]
        %v755 = vld [vmem:[%s4 + $0x8] sm:$0xf]
        %v756 = vld [vmem:[%s4 + $0xc] sm:$0xf]
        %v757 = vld [vmem:[%s4 + $0x10] sm:$0xf]
        %v758 = vld [vmem:[%s4 + $0x14] sm:$0xf]
        %v759 = vld [vmem:[%s4 + $0x18] sm:$0xf]
        %v760 = vld [vmem:[%s4 + $0x1c] sm:$0xf]
        %v761 = vld [vmem:[#allocation5 + $0x3] sm:$0x1]
        %v762 = vperm.slane %v761, 0
        %v771 = vunpack.c.l.b16 %v753
        %v772 = vunpack.c.l.b16 %v754
        %v773 = vunpack.c.l.b16 %v755
        %v774 = vunpack.c.l.b16 %v756
        %v775 = vunpack.c.l.b16 %v757
        %v776 = vunpack.c.l.b16 %v758
        %v777 = vunpack.c.l.b16 %v759
        %v778 = vunpack.c.l.b16 %v760
        %v779 = vpack.c.b16 %v772, %v771
        %v780 = vpack.c.b16 %v774, %v773
        %v781 = vpack.c.b16 %v776, %v775
        %v782 = vpack.c.b16 %v778, %v777
        %vm787 = vcmask 523264
        %v789 = vsel %vm787, %v752, 0
        %791 = vmatpush.bf16.msra.mxu0 0
        %792 = vmatpush.bf16.msra.mxu0 0
        %793 = vmatpush.bf16.msra.mxu0 0
        %794 = vmatpush.bf16.msra.mxu0 0
        %795 = vmatpush.bf16.msra.mxu0 %v782
        %796 = vmatpush.bf16.msra.mxu0 %v781
        %797 = vmatpush.bf16.msra.mxu0 %v780
        %798 = vmatpush.bf16.msra.mxu0 %v779
        %799 = vmatmul.bf16.gmra.mxu0 %v789
        %v800 = vpop.f32.mrf.mxu0
        %v801 = vadd.f32 %v762, %v800
        %v802 = vpop.f32.mrf.mxu0
        %803 = vdwg.mxu0
        %v804 = vadd.f32 %v672, %v801
        %v805 = vld [vmem:[#allocation5 + $0x6] sm:$0x1]
        %v806 = vld [vmem:[#allocation5 + $0x7] sm:$0x1]
        %v807 = vsel %vm300, %v804, 0.0
        %808 = vadd.xlane.f32.xlu0 %v807
        %v809 = vpop.xlane.xlu0 %808
        %v810 = vmul.f32 %v809, %v649
        %v811 = vsub.f32 %v804, %v810
        %v812 = vmul.f32 %v811, %v811
        %v813 = vsel %vm300, %v812, 0.0
        %814 = vadd.xlane.f32.xlu0 %v813
        %v815 = vpop.xlane.xlu0 %814
        %v816 = vmul.f32 %v815, %v649
        %v817 = vadd.f32 %v816, 1e-05
        %v818 = vrsqrt.pop %v817
        %v819 = vmul.f32 %v818, %v817
        %v820 = vmul.f32 %v819, %v818
        %v821 = vmul.f32 0.5, %v820
        %v822 = vsub.f32 1.5, %v821
        %v823 = vmul.f32 %v818, %v822
        %vm824 = vweird.f32 %v817
        %vm825 = vweird.f32 %v818
        %vm826 = vmor %vm824, %vm825
        %v827 = vsel %vm826, %v818, %v823
        %v828 = vmul.f32 %v811, %v827
        %v829 = vperm.slane %v805, 0
        %v830 = vmul.f32 %v828, %v829
        %v831 = vperm.slane %v806, 0
        %v832 = vadd.f32 %v830, %v831
        %833 = vst.msk [vmem:[%s274] sm:$0xff] %vm300, %v832
        %s834 = sand.u32 %s161, 1
        %s835 = scalar_lea.sflag [#allocation4], %s834
        %s836 = sand.u32 %s161, 1
        %s837 = smul.addr %s836, 8
        %s838 = scalar_lea.vmem [#allocation7], %s837
        // Predicated region
        $region53: #{tpu_custom_call.1} parent=43 // pred_check
          %p839 = pneg %p171
        $region54: #{tpu_custom_call.1} parent=43 // pred_check_branch
          %841 = sbr.rel (%p839) target = $region56
        $region55: #{tpu_custom_call.1} parent=43 // pred_region
          %843 = vsyncadd %s835, 0
          %s844 = smul.addr %s22, 8
          %s845 = scalar_lea.hbm %s6, %s844
          %s847 = sshll.u32 %s838, 4
          %s848 = int_to_ptr.vmem [resolvable:$true] %s847
          %s849 = sshll.u32 %s845, 4
          %s850 = int_to_ptr.hbm [resolvable:$true] %s849
          %852 = dma.vmem_to_hbm [thread:$0]  %s848, 128, %s850, %s835
        $region56: #{tpu_custom_call.1} parent=43 // pred_fallthru
          _
      $region44: #{tpu_custom_call.1} parent=5 // pred_fallthru
        _
      %p853 = scmp.le.s32.totalorder 2, %s17
      // Predicated region
      $region57: #{tpu_custom_call.1} parent=5 // pred_check
        %p854 = pneg %p853
      $region58: #{tpu_custom_call.1} parent=5 // pred_check_branch
        %856 = sbr.rel (%p854) target = $region60
      $region59: #{tpu_custom_call.1} parent=5 // pred_region
        %s857 = ssub.s32 %s17, 2
        // Predicated region
        $region61: #{tpu_custom_call.1} parent=59 // pred_check
          %p858 = pneg %p177
        $region62: #{tpu_custom_call.1} parent=59 // pred_check_branch
          %860 = sbr.rel (%p858) target = $region64
        $region63: #{tpu_custom_call.1} parent=59 // pred_region
          %s861 = sand.u32 %s162, 1
          %s862 = scalar_lea.sflag [#allocation4], %s861
          %s863 = sand.u32 %s162, 1
          %s864 = smul.addr %s863, 8
          %s865 = scalar_lea.vmem [#allocation7], %s864
          %867 = dma.done %s862, 128
        $region64: #{tpu_custom_call.1} parent=59 // pred_fallthru
          _
      $region60: #{tpu_custom_call.1} parent=5 // pred_fallthru
        _
    $region6: #{tpu_custom_call.1} parent=1 // loop_footer
      %s21 = sadd.s32 1, %s17
    $region7: #{tpu_custom_call.1} parent=1 // loop_footer_branch
      %16 = sbr.rel target = $region3
    $region8: #{tpu_custom_call.1} parent=1 // loop_exit
      _
    %868 = vsyncpa [#allocation3], 1
    %s869 = scalar_lea.sflag [#allocation3], 1
    %870 = vsyncpa %s869, 1
    %871 = vsyncpa [#allocation6], 1
    %872 = vsyncpa [#allocation4], 1
    %s873 = scalar_lea.sflag [#allocation4], 1
    %874 = vsyncpa %s873, 1

</llo_original>
